<compile_context>
chip_gen: v5e
topology: v5e:2x2
jax: 0.10.0
libtpu: 0.0.40
codegen_flags: <defaults>
</compile_context>

<pallas_src>
import functools

import jax
import jax.numpy as jnp
import numpy as np
from jax.experimental import pallas as pl
from jax.experimental.pallas import tpu as pltpu


def make_positional_encoding(d_model: int, max_len: int = 5000,
                             dtype=jnp.float32) -> jax.Array:
    """Deterministic buffer init, mirroring the PyTorch __init__ exactly."""
    assert d_model % 2 == 0, "d_model must be even (same limit as the PyTorch module)"
    position = jnp.arange(max_len, dtype=jnp.float32)[:, None]              # (max_len, 1)
    div_term = jnp.exp(
        jnp.arange(0, d_model, 2, dtype=jnp.float32)
        * (-jnp.log(jnp.float32(10000.0)) / d_model))                       # (d_model/2,)
    pe = jnp.zeros((max_len, d_model), dtype=jnp.float32)
    pe = pe.at[:, 0::2].set(jnp.sin(position * div_term))
    pe = pe.at[:, 1::2].set(jnp.cos(position * div_term))
    # unsqueeze(0).transpose(0, 1) -> (max_len, 1, d_model)
    return pe[:, None, :].astype(dtype)


def _add_pe_kernel(x_ref, pe_ref, o_ref, *, batch: int):
    # x_ref: (ts, B*D); pe_ref: (ts, D).
    # In-kernel cast + lane-tile are VPU/XLU filler hidden under the HBM stream.
    pe = pe_ref[...].astype(x_ref.dtype)
    if batch > 1:
        # (ts, D) -> (ts, B*D); result[:, b*D + d] == pe[:, d], matching the
        # row-major fold of x's (B, D) trailing dims.
        pe = jnp.tile(pe, (1, batch))
    o_ref[...] = x_ref[...] + pe


def _chip_params():
    """Returns (target x/out block bytes, TensorCores to keep busy)."""
    kind = ""
    try:
        kind = jax.devices()[0].device_kind.lower()
    except Exception:
        pass
    if "v7" in kind:
        # 3.2 TB/s HBM: a 2 MiB step is ~1.25 us vs ~0.35 us fixed per-step
        # overhead, so use 6 MiB blocks; x+out double-buffered = 24 MiB, under
        # the 32 MiB default scoped VMEM (64 MiB physical). 2 TCs share grid.
        return 6 * 1024 * 1024, 2
    if "v6" in kind:
        # Single TC; 4 MiB blocks (16 MiB double-buffered) fit the 32 MiB default.
        return 4 * 1024 * 1024, 1
    # v5e / unknown: stay safely under the 16 MiB default scoped VMEM.
    return 2 * 1024 * 1024, 1


def _choose_seq_tile(S: int, row_bytes: int, target_bytes: int, num_tc: int) -> int:
    ts = max(1, min(S, target_bytes // max(1, row_bytes)))
    if num_tc >= 2 and S > 1:
        grid = -(-S // ts)
        if grid % num_tc:
            # Best effort: make the step count a multiple of the core count so
            # the "parallel" grid axis keeps every TensorCore busy on the tail.
            grid = (grid // num_tc + 1) * num_tc
            ts = -(-S // grid)
    if ts < S:
        # Sublane (second-to-last) block dim: keep it a multiple of 8 so tiles
        # map cleanly onto (8, 128) vreg tiling when we do block the seq axis.
        ts = max(8, (ts // 8) * 8)
        ts = min(ts, S)
    return ts


def positional_encoding_forward(x: jax.Array, pe: jax.Array,
                                *, donate_x: bool = False) -> jax.Array:
    """x: (seq_len, batch, d_model); pe: (max_len, 1, d_model)."""
    S, B, D = x.shape
    max_len = pe.shape[0]
    assert S <= max_len, "sequence longer than positional-encoding buffer"
    assert pe.shape[-1] == D, "d_model mismatch between x and pe"

    # Fold batch into the last dim so output stores are lane-dense (B*D lanes
    # instead of D).  Both reshapes are metadata-only on contiguous arrays.
    x2d = x.reshape(S, B * D)
    pe2d = pe.reshape(max_len, D)

    target_bytes, num_tc = _chip_params()
    row_bytes = B * D * jnp.dtype(x.dtype).itemsize
    ts = _choose_seq_tile(S, row_bytes, target_bytes, num_tc)
    grid = (pl.cdiv(S, ts),)

    # Last block dims equal the full array extents, so each block is one
    # contiguous HBM slab and the (8,128) lane rule never triggers there.
    out2d = pl.pallas_call(
        functools.partial(_add_pe_kernel, batch=B),
        out_shape=jax.ShapeDtypeStruct((S, B * D), x.dtype),
        grid=grid,
        in_specs=[
            pl.BlockSpec((ts, B * D), lambda i: (i, 0)),   # x rows (ts seq steps)
            pl.BlockSpec((ts, D), lambda i: (i, 0)),       # matching pe rows
        ],
        out_specs=pl.BlockSpec((ts, B * D), lambda i: (i, 0)),
        compiler_params=pltpu.CompilerParams(
            dimension_semantics=("parallel",)),
        input_output_aliases=({0: 0} if donate_x else {}),
    )(x2d, pe2d)
    return out2d.reshape(S, B, D)


if __name__ == "__main__":
    key = jax.random.PRNGKey(0)

    # Primary small test shape implied by the module: (seq, batch, d_model).
    seq_len, batch, d_model = 8, 2, 32
    pe = make_positional_encoding(d_model=d_model, max_len=5000, dtype=jnp.float32)
    x = jax.random.normal(key, (seq_len, batch, d_model), dtype=jnp.float32)
    out = jax.block_until_ready(positional_encoding_forward(x, pe))
    ref = x + pe[:seq_len]
    np.testing.assert_allclose(np.asarray(out), np.asarray(ref),
                               rtol=1e-6, atol=1e-6)

    # Secondary check: lane-dense d_model, seq length not a multiple of 8.
    pe2 = make_positional_encoding(d_model=128, max_len=5000, dtype=jnp.float32)
    x2 = jax.random.normal(jax.random.PRNGKey(1), (37, 4, 128), dtype=jnp.float32)
    out2 = jax.block_until_ready(positional_encoding_forward(x2, pe2))
    ref2 = x2 + pe2[:37]
    np.testing.assert_allclose(np.asarray(out2), np.asarray(ref2),
                               rtol=1e-6, atol=1e-6)

    print("KERNEL_OK")
</pallas_src>

<mosaic_0001>
module attributes {stable_mosaic.version = 11 : i64} {
  func.func @_add_pe_kernel(%arg0: i32, %arg1: memref<8x64xf32, #tpu.memory_space<vmem>>, %arg2: memref<8x32xf32, #tpu.memory_space<vmem>>, %arg3: memref<8x64xf32, #tpu.memory_space<vmem>>) attributes {dimension_semantics = [#tpu.dimension_semantics<parallel>], iteration_bounds = array<i64: 1>, scalar_prefetch = 0 : i64, scratch_operands = 0 : i64, tpu.core_type = #tpu.core_type<tc>, window_params = [{transform_indices = @transform_0, window_bounds = array<i64: 8, 64>}, {transform_indices = @transform_1, window_bounds = array<i64: 8, 32>}, {transform_indices = @transform_2, window_bounds = array<i64: 8, 64>}]} {
    %c0 = arith.constant 0 : index
    %c0_0 = arith.constant 0 : index
    %0 = vector.load %arg2[%c0, %c0_0] : memref<8x32xf32, #tpu.memory_space<vmem>>, vector<8x32xf32>
    %1 = tpu.concatenate %0, %0 in 1 : vector<8x32xf32>, vector<8x32xf32> -> vector<8x64xf32>
    %c0_1 = arith.constant 0 : index
    %c0_2 = arith.constant 0 : index
    %2 = vector.load %arg1[%c0_1, %c0_2] : memref<8x64xf32, #tpu.memory_space<vmem>>, vector<8x64xf32>
    %3 = arith.addf %2, %1 : vector<8x64xf32>
    %c0_3 = arith.constant 0 : index
    %c0_4 = arith.constant 0 : index
    %4 = vector.load %arg3[%c0_3, %c0_4] : memref<8x64xf32, #tpu.memory_space<vmem>>, vector<8x64xf32>
    tpu.vector_store %arg3[%c0_3, %c0_4], %3 {strides = array<i32>} : memref<8x64xf32, #tpu.memory_space<vmem>>, vector<8x64xf32>,
    return
  }
  func.func @transform_0(%arg0: i32) -> (i32, i32) {
    %c0_i32 = arith.constant 0 : i32
    %c0_i32_0 = arith.constant 0 : i32
    return %arg0, %c0_i32 : i32, i32
  }
  func.func @transform_1(%arg0: i32) -> (i32, i32) {
    %c0_i32 = arith.constant 0 : i32
    %c0_i32_0 = arith.constant 0 : i32
    return %arg0, %c0_i32 : i32, i32
  }
  func.func @transform_2(%arg0: i32) -> (i32, i32) {
    %c0_i32 = arith.constant 0 : i32
    %c0_i32_0 = arith.constant 0 : i32
    return %arg0, %c0_i32 : i32, i32
  }
}

</mosaic_0001>

<llo_original>
// kernel: tpu_custom_call.1
$region0: #{tpu_custom_call.1}
  #allocation0 [shape = 'u32[]', space=smem, size = 0x4, offset = 0x4, fixed_abs, tag = 'smem constant byte address 0x4 - core index']
  #allocation1 [shape = 'u32[72,128]{1,0:T(1,128)}', space=vmem, size = 0x9000, scoped, tag = 'internal scratch']
  %s0 = inlined_call_operand.vmem [shape: f32[8,64], index: 0, kind: input, shape index: {}]
  %s1 = inlined_call_operand.vmem [shape: f32[5000,32], index: 1, kind: input, shape index: {}]
  %s2 = inlined_call_operand.hbm [shape: f32[8,64], index: 2, kind: output, shape index: {}]
  %s3 = sld [smem:[#allocation0]]
  $region18: #{tpu_custom_call.1} parent=0
    _
  %s5 = ssub.s32 1, %s3
  %s6 = scalar_select 0, %s5, %s3
  $region1: #{tpu_custom_call.1} parent=0
    #allocation2 [shape = 'u8[4096]{0}', space=vmem, size = 0x1000, scoped, tag = 'output window, operand 0, single buffered']
    #allocation3 [shape = 's32[1]{0}', space=sflag, size = 0x4, scoped, tag = 'scoped memory for tpu_custom_call.1']
    %7 = vsyncpa [#allocation3], 0
    // Predicated region
    $region2: #{tpu_custom_call.1} parent=1 // pred_check
      _
    $region3: #{tpu_custom_call.1} parent=1 // pred_check_branch
      %9 = sbr.rel (0) target = $region5
    $region4: #{tpu_custom_call.1} parent=1 // pred_region
      _
    $region5: #{tpu_custom_call.1} parent=1 // pred_fallthru
      _
    // Predicated region
    $region6: #{tpu_custom_call.1} parent=1 // pred_check
      _
    $region7: #{tpu_custom_call.1} parent=1 // pred_check_branch
      %11 = sbr.rel (0) target = $region9
    $region8: #{tpu_custom_call.1} parent=1 // pred_region
      _
    $region9: #{tpu_custom_call.1} parent=1 // pred_fallthru
      _
    %v12 = vld [vmem:[%s1] sm:$0xff]
    %14 = vrot.lane.b32.xlu0 %v12, 32
    %v15 = vpop.permute.xlu0 %14
    %vm17 = vcmask 261120
    %v18 = vsel %vm17, %v12, %v15
    %v19 = vld [vmem:[%s0] sm:$0xff]
    %v20 = vadd.f32 %v19, %v18
    %vm21 = vcmask 523264
    %22 = vst.msk [vmem:[#allocation2] sm:$0xff] %vm21, %v20
    // Predicated region
    $region10: #{tpu_custom_call.1} parent=1 // pred_check
      _
    $region11: #{tpu_custom_call.1} parent=1 // pred_check_branch
      %24 = sbr.rel (0) target = $region13
    $region12: #{tpu_custom_call.1} parent=1 // pred_region
      %26 = vsyncadd [#allocation3], 0
      %s28 = sshll.u32 [#allocation2], 4
      %s29 = int_to_ptr.vmem [resolvable:$true] %s28
      %s30 = sshll.u32 %s2, 4
      %s31 = int_to_ptr.hbm [resolvable:$true] %s30
      %33 = dma.vmem_to_hbm [thread:$0]  %s29, 128, %s31, [#allocation3]
    $region13: #{tpu_custom_call.1} parent=1 // pred_fallthru
      _
    // Predicated region
    $region14: #{tpu_custom_call.1} parent=1 // pred_check
      _
    $region15: #{tpu_custom_call.1} parent=1 // pred_check_branch
      %35 = sbr.rel (0) target = $region17
    $region16: #{tpu_custom_call.1} parent=1 // pred_region
      %37 = dma.done [#allocation3], 128
    $region17: #{tpu_custom_call.1} parent=1 // pred_fallthru
      _
    %38 = vsyncpa [#allocation3], 1

</llo_original>
